<compile_context>
chip_gen: v6e
topology: v6e:2x2x1
jax: 0.10.0
libtpu: 0.0.40
codegen_flags: <defaults>
</compile_context>

<pallas_src>
import jax
import jax.numpy as jnp
import numpy as np
from jax import lax
from jax.experimental import pallas as pl
from jax.experimental.pallas import tpu as pltpu


def _length_regulator_kernel(start_ref, end_ref, x_ref, out_ref):
    # start_ref, end_ref: (1, 1, T) int32 (exclusive / inclusive cumsum of dur)
    # x_ref:  (1, T, Hp)
    # out_ref: (1, TL, Hp)
    T = x_ref.shape[1]
    TL = out_ref.shape[1]

    start = start_ref[0]                                   # [1, T] int32, lane-dense
    end = end_ref[0]                                       # [1, T] int32

    # global frame index of each row of this output tile
    j0 = pl.program_id(1) * TL
    j = j0 + lax.broadcasted_iota(jnp.int32, (TL, T), 0)   # [TL, T] int32

    # one-hot expansion matrix: frame j selects token i iff start_i <= j < end_i
    sel = jnp.logical_and(j >= start, j < end)             # [TL, T] bool
    m = sel.astype(x_ref.dtype)                            # single cast to matmul dtype

    # hot path: expansion as an MXU matmul [TL, T] @ [T, Hp] -> [TL, Hp]
    out_ref[0] = jnp.dot(m, x_ref[0],
                         preferred_element_type=jnp.float32).astype(out_ref.dtype)


def length_regulator(x, duration, max_len, tile_l=256):
    """x: [B, T, H] float, duration: [B, T] int, returns ([B, max_len, H], [B])."""
    B, T, H = x.shape
    dur = duration.astype(jnp.int32)

    # prefix sums hoisted out of the kernel (int32, exact)
    end = jnp.cumsum(dur, axis=-1)                         # inclusive cumsum  [B, T]
    start = end - dur                                      # exclusive cumsum  [B, T]
    start3 = start.reshape(B, 1, T)                        # lane-major (lanes = T)
    end3 = end.reshape(B, 1, T)

    # pad H to a lane-dense multiple of 128, max_len to a multiple of TL
    Hp = pl.cdiv(H, 128) * 128
    TL = min(tile_l, pl.cdiv(max_len, 128) * 128)
    Lp = pl.cdiv(max_len, TL) * TL
    n_l_tiles = Lp // TL

    x_p = x if Hp == H else jnp.pad(x, ((0, 0), (0, 0), (0, Hp - H)))

    out_p = pl.pallas_call(
        _length_regulator_kernel,
        out_shape=jax.ShapeDtypeStruct((B, Lp, Hp), x.dtype),
        grid=(B, n_l_tiles),
        in_specs=[
            pl.BlockSpec((1, 1, T), lambda b, l: (b, 0, 0)),
            pl.BlockSpec((1, 1, T), lambda b, l: (b, 0, 0)),
            pl.BlockSpec((1, T, Hp), lambda b, l: (b, 0, 0)),
        ],
        out_specs=pl.BlockSpec((1, TL, Hp), lambda b, l: (b, l, 0)),
        compiler_params=pltpu.CompilerParams(
            dimension_semantics=("parallel", "parallel")),
    )(start3, end3, x_p)

    out = out_p[:, :max_len, :H]

    # glue: mel_len (pre-padding expanded length) = sum of durations per batch
    mel_len = jnp.sum(dur, axis=-1)
    return out, mel_len


def _reference(x, duration, max_len):
    x = np.asarray(x)
    duration = np.asarray(duration)
    B, T, H = x.shape
    out = np.zeros((B, max_len, H), dtype=x.dtype)
    mel = []
    for b in range(B):
        expanded = np.repeat(x[b], duration[b], axis=0)    # == expand + cat
        mel.append(expanded.shape[0])
        n = min(expanded.shape[0], max_len)
        out[b, :n] = expanded[:n]                          # == utils.pad
    return out, np.asarray(mel, dtype=np.int32)


if __name__ == "__main__":
    B, T, H, MAX_LEN = 2, 8, 32, 40

    key = jax.random.PRNGKey(0)
    kx, kd = jax.random.split(key)
    x = jax.random.normal(kx, (B, T, H), dtype=jnp.float32)
    duration = jax.random.randint(kd, (B, T), 0, 5, dtype=jnp.int32)

    out, mel_len = length_regulator(x, duration, MAX_LEN)
    out = jax.block_until_ready(out)
    mel_len = jax.block_until_ready(mel_len)

    ref_out, ref_mel = _reference(x, duration, MAX_LEN)
    assert np.allclose(np.asarray(out), ref_out, atol=1e-5), "output mismatch"
    assert np.array_equal(np.asarray(mel_len), ref_mel), "mel_len mismatch"

    print("KERNEL_OK")
</pallas_src>

<mosaic_0001>
module attributes {stable_mosaic.version = 11 : i64} {
  func.func @_length_regulator_kernel(%arg0: i32, %arg1: i32, %arg2: memref<1x1x8xi32, #tpu.memory_space<vmem>>, %arg3: memref<1x1x8xi32, #tpu.memory_space<vmem>>, %arg4: memref<1x8x128xf32, #tpu.memory_space<vmem>>, %arg5: memref<1x128x128xf32, #tpu.memory_space<vmem>>) attributes {dimension_semantics = [#tpu.dimension_semantics<parallel>, #tpu.dimension_semantics<parallel>], iteration_bounds = array<i64: 2, 1>, scalar_prefetch = 0 : i64, scratch_operands = 0 : i64, tpu.core_type = #tpu.core_type<tc>, window_params = [{transform_indices = @transform_0, window_bounds = array<i64: 1, 1, 8>}, {transform_indices = @transform_1, window_bounds = array<i64: 1, 1, 8>}, {transform_indices = @transform_2, window_bounds = array<i64: 1, 8, 128>}, {transform_indices = @transform_3, window_bounds = array<i64: 1, 128, 128>}]} {
    %c0 = arith.constant 0 : index
    %c0_0 = arith.constant 0 : index
    %c0_1 = arith.constant 0 : index
    %0 = vector.load %arg2[%c0, %c0_0, %c0_1] : memref<1x1x8xi32, #tpu.memory_space<vmem>>, vector<1x1x8xi32>
    %1 = vector.shape_cast %0 : vector<1x1x8xi32> to vector<1x8xi32>
    %c0_2 = arith.constant 0 : index
    %c0_3 = arith.constant 0 : index
    %c0_4 = arith.constant 0 : index
    %2 = vector.load %arg3[%c0_2, %c0_3, %c0_4] : memref<1x1x8xi32, #tpu.memory_space<vmem>>, vector<1x1x8xi32>
    %3 = vector.shape_cast %2 : vector<1x1x8xi32> to vector<1x8xi32>
    %c128_i32 = arith.constant 128 : i32
    %4 = arith.muli %arg1, %c128_i32 : i32
    %5 = tpu.iota {dimensions = array<i32: 0>} : vector<128x8xi32>
    %6 = vector.broadcast %4 : i32 to vector<128x8xi32>
    %7 = arith.addi %6, %5 : vector<128x8xi32>
    %8 = vector.broadcast %1 : vector<1x8xi32> to vector<128x8xi32>
    %9 = arith.cmpi sge, %7, %8 : vector<128x8xi32>
    %10 = vector.broadcast %3 : vector<1x8xi32> to vector<128x8xi32>
    %11 = arith.cmpi slt, %7, %10 : vector<128x8xi32>
    %12 = arith.andi %9, %11 : vector<128x8xi1>
    %13 = arith.extui %12 : vector<128x8xi1> to vector<128x8xi32>
    %14 = arith.sitofp %13 : vector<128x8xi32> to vector<128x8xf32>
    %c0_5 = arith.constant 0 : index
    %c0_6 = arith.constant 0 : index
    %c0_7 = arith.constant 0 : index
    %15 = vector.load %arg4[%c0_5, %c0_6, %c0_7] : memref<1x8x128xf32, #tpu.memory_space<vmem>>, vector<1x8x128xf32>
    %16 = vector.shape_cast %15 : vector<1x8x128xf32> to vector<8x128xf32>
    %cst = arith.constant dense<0.000000e+00> : vector<128x128xf32>
    %17 = tpu.matmul %14, %16, %cst {dimension_numbers = #tpu.dot_dimension_numbers<[1], [0], [0], [1], [0, 0, 1, 1], [], []>} : vector<128x8xf32>, vector<8x128xf32>, vector<128x128xf32> -> vector<128x128xf32>
    %c0_8 = arith.constant 0 : index
    %c0_9 = arith.constant 0 : index
    %c0_10 = arith.constant 0 : index
    %18 = vector.load %arg5[%c0_8, %c0_9, %c0_10] : memref<1x128x128xf32, #tpu.memory_space<vmem>>, vector<1x128x128xf32>
    %19 = vector.shape_cast %18 : vector<1x128x128xf32> to vector<128x128xf32>
    %20 = vector.shape_cast %17 : vector<128x128xf32> to vector<1x128x128xf32>
    tpu.vector_store %arg5[%c0_8, %c0_9, %c0_10], %20 {strides = array<i32>} : memref<1x128x128xf32, #tpu.memory_space<vmem>>, vector<1x128x128xf32>,
    return
  }
  func.func @transform_0(%arg0: i32, %arg1: i32) -> (i32, i32, i32) {
    %c0_i32 = arith.constant 0 : i32
    %c0_i32_0 = arith.constant 0 : i32
    %c0_i32_1 = arith.constant 0 : i32
    return %arg0, %c0_i32, %c0_i32_0 : i32, i32, i32
  }
  func.func @transform_1(%arg0: i32, %arg1: i32) -> (i32, i32, i32) {
    %c0_i32 = arith.constant 0 : i32
    %c0_i32_0 = arith.constant 0 : i32
    %c0_i32_1 = arith.constant 0 : i32
    return %arg0, %c0_i32, %c0_i32_0 : i32, i32, i32
  }
  func.func @transform_2(%arg0: i32, %arg1: i32) -> (i32, i32, i32) {
    %c0_i32 = arith.constant 0 : i32
    %c0_i32_0 = arith.constant 0 : i32
    %c0_i32_1 = arith.constant 0 : i32
    return %arg0, %c0_i32, %c0_i32_0 : i32, i32, i32
  }
  func.func @transform_3(%arg0: i32, %arg1: i32) -> (i32, i32, i32) {
    %c0_i32 = arith.constant 0 : i32
    %c0_i32_0 = arith.constant 0 : i32
    return %arg0, %arg1, %c0_i32 : i32, i32, i32
  }
}

</mosaic_0001>

<llo_original>
// kernel: tpu_custom_call.1
$region0: #{tpu_custom_call.1}
  #allocation0 [shape = 'u32[]', space=smem, size = 0x4, offset = 0x4, fixed_abs, tag = 'smem constant byte address 0x4 - core index']
  #allocation1 [shape = 'u32[144,128]{1,0:T(1,128)}', space=vmem, size = 0x12000, scoped, tag = 'internal scratch']
  %s0 = inlined_call_operand.hbm [shape: s32[2,1,8], index: 0, kind: input, shape index: {}]
  %s1 = inlined_call_operand.hbm [shape: s32[2,1,8], index: 1, kind: input, shape index: {}]
  %s2 = inlined_call_operand.hbm [shape: f32[2,8,128], index: 2, kind: input, shape index: {}]
  %s3 = inlined_call_operand.hbm [shape: f32[2,128,128], index: 3, kind: output, shape index: {}]
  %s4 = sld [smem:[#allocation0]]
  $region57: #{tpu_custom_call.1} parent=0
    _
  %s6 = ssub.s32 1, %s4
  %s7 = scalar_select 0, %s6, %s4
  $region1: #{tpu_custom_call.1} parent=0
    #allocation2 [shape = 'u8[1024]{0}', space=vmem, size = 0x400, scoped, tag = 'input window, operand 0']
    #allocation3 [shape = 's32[2]{0}', space=sflag, size = 0x8, scoped, tag = 'scoped memory for tpu_custom_call.1']
    #allocation4 [shape = 's32[2]{0}', space=sflag, size = 0x8, scoped, tag = 'scoped memory for tpu_custom_call.1']
    #allocation5 [shape = 'u8[1024]{0}', space=vmem, size = 0x400, scoped, tag = 'input window, operand 1']
    #allocation6 [shape = 's32[2]{0}', space=sflag, size = 0x8, scoped, tag = 'scoped memory for tpu_custom_call.1']
    #allocation7 [shape = 'u8[8192]{0}', space=vmem, size = 0x2000, scoped, tag = 'input window, operand 2']
    #allocation8 [shape = 'u8[131072]{0}', space=vmem, size = 0x20000, scoped, tag = 'output window, operand 0']
    %8 = vsyncpa [#allocation3], 0
    %s9 = scalar_lea.sflag [#allocation3], 1
    %10 = vsyncpa %s9, 0
    %11 = vsyncpa [#allocation6], 0
    %s12 = scalar_lea.sflag [#allocation6], 1
    %13 = vsyncpa %s12, 0
    %14 = vsyncpa [#allocation4], 0
    %s15 = scalar_lea.sflag [#allocation4], 1
    %16 = vsyncpa %s15, 0
    loop: start=0, step=1, limit=4
    $region2: #{tpu_custom_call.1} parent=1 // loop_pre_header
      _
    $region3: #{tpu_custom_call.1} parent=1 // loop_header
      %s18 = sphi 0, %s22
      %p19 = scmp.ge.s32.totalorder %s18, 4
      %s25 = sphi 0, %s37
      %s26 = sphi 0, %s33
      %s27 = sphi 0, %s25
      %s28 = sphi 0, %s26
      %s29 = sphi 0, %s27
      %s30 = sphi 0, %s28
      %s40 = sphi 0, %s42
      %s43 = sphi 0, %s40
      %s44 = sphi 0, %s43
      %s60 = sphi 0, %s44
      %s66 = sphi 0, %s68
      %s69 = sphi 0, %s66
      %s70 = sphi 0, %s69
      %s86 = sphi 0, %s70
      %s92 = sphi 0, %s94
      %s95 = sphi 0, %s92
      %s96 = sphi 0, %s95
      %s112 = sphi 0, %s96
      %s120 = sphi 0, %s122
      %s123 = sphi 0, %s120
      %s124 = sphi 0, %s123
      %s140 = sphi 0, %s124
    $region4: #{tpu_custom_call.1} parent=1 // loop_header_branch
      %21 = sbr.rel (%p19) target = $region8
    $region5: #{tpu_custom_call.1} parent=1 // loop_body
      %s23 = ssub.s32 %s18, 1
      %s24 = ssub.s32 %s18, 2
      %s31 = sadd.s32 1, %s26
      %p32 = scmp.ge.s32.totalorder %s31, 1
      %s33 = scalar_select %p32, 0, %s31
      %s34 = sadd.s32 1, %s25
      %s35 = scalar_select %p32, %s34, %s25
      %p36 = scmp.ge.s32.totalorder %s35, 2
      %s37 = scalar_select %p36, 0, %s35
      %s38 = ssub.s32 %s25, %s37
      %p39 = scmp.eq.s32.totalorder %s38, 0
      %s41 = sadd.s32 %s40, 1
      %s42 = scalar_select %p39, %s40, %s41
      %p45 = pneg %p39
      %p46 = scmp.eq.s32.totalorder %s18, 1
      %p47 = por %p45, %p46
      %p48 = scmp.ne.s32.totalorder %s40, %s43
      %p49 = scmp.eq.s32.totalorder %s18, 0
      %p50 = por %p48, %p49
      %p51 = scmp.ne.s32.totalorder %s40, %s43
      %p52 = scmp.eq.s32.totalorder %s23, 1
      %p53 = por %p51, %p52
      %p54 = scmp.ne.s32.totalorder %s43, %s44
      %p55 = scmp.eq.s32.totalorder %s23, 0
      %p56 = por %p54, %p55
      %p57 = scmp.ne.s32.totalorder %s43, %s44
      %p58 = scmp.eq.s32.totalorder %s24, 1
      %p59 = por %p57, %p58
      %p61 = scmp.ne.s32.totalorder %s44, %s60
      %p62 = scmp.eq.s32.totalorder %s24, 0
      %p63 = por %p61, %p62
      %s64 = ssub.s32 %s25, %s37
      %p65 = scmp.eq.s32.totalorder %s64, 0
      %s67 = sadd.s32 %s66, 1
      %s68 = scalar_select %p65, %s66, %s67
      %p71 = pneg %p65
      %p72 = scmp.eq.s32.totalorder %s18, 1
      %p73 = por %p71, %p72
      %p74 = scmp.ne.s32.totalorder %s66, %s69
      %p75 = scmp.eq.s32.totalorder %s18, 0
      %p76 = por %p74, %p75
      %p77 = scmp.ne.s32.totalorder %s66, %s69
      %p78 = scmp.eq.s32.totalorder %s23, 1
      %p79 = por %p77, %p78
      %p80 = scmp.ne.s32.totalorder %s69, %s70
      %p81 = scmp.eq.s32.totalorder %s23, 0
      %p82 = por %p80, %p81
      %p83 = scmp.ne.s32.totalorder %s69, %s70
      %p84 = scmp.eq.s32.totalorder %s24, 1
      %p85 = por %p83, %p84
      %p87 = scmp.ne.s32.totalorder %s70, %s86
      %p88 = scmp.eq.s32.totalorder %s24, 0
      %p89 = por %p87, %p88
      %s90 = ssub.s32 %s25, %s37
      %p91 = scmp.eq.s32.totalorder %s90, 0
      %s93 = sadd.s32 %s92, 1
      %s94 = scalar_select %p91, %s92, %s93
      %p97 = pneg %p91
      %p98 = scmp.eq.s32.totalorder %s18, 1
      %p99 = por %p97, %p98
      %p100 = scmp.ne.s32.totalorder %s92, %s95
      %p101 = scmp.eq.s32.totalorder %s18, 0
      %p102 = por %p100, %p101
      %p103 = scmp.ne.s32.totalorder %s92, %s95
      %p104 = scmp.eq.s32.totalorder %s23, 1
      %p105 = por %p103, %p104
      %p106 = scmp.ne.s32.totalorder %s95, %s96
      %p107 = scmp.eq.s32.totalorder %s23, 0
      %p108 = por %p106, %p107
      %p109 = scmp.ne.s32.totalorder %s95, %s96
      %p110 = scmp.eq.s32.totalorder %s24, 1
      %p111 = por %p109, %p110
      %p113 = scmp.ne.s32.totalorder %s96, %s112
      %p114 = scmp.eq.s32.totalorder %s24, 0
      %p115 = por %p113, %p114
      %s116 = ssub.s32 %s25, %s37
      %s117 = ssub.s32 %s26, %s33
      %s118 = sor.u32 %s116, %s117
      %p119 = scmp.eq.s32.totalorder %s118, 0
      %s121 = sadd.s32 %s120, 1
      %s122 = scalar_select %p119, %s120, %s121
      %p125 = pneg %p119
      %p126 = scmp.eq.s32.totalorder %s18, 1
      %p127 = por %p125, %p126
      %p128 = scmp.ne.s32.totalorder %s120, %s123
      %p129 = scmp.eq.s32.totalorder %s18, 0
      %p130 = por %p128, %p129
      %p131 = scmp.ne.s32.totalorder %s120, %s123
      %p132 = scmp.eq.s32.totalorder %s23, 1
      %p133 = por %p131, %p132
      %p134 = scmp.ne.s32.totalorder %s123, %s124
      %p135 = scmp.eq.s32.totalorder %s23, 0
      %p136 = por %p134, %p135
      %p137 = scmp.ne.s32.totalorder %s123, %s124
      %p138 = scmp.eq.s32.totalorder %s24, 1
      %p139 = por %p137, %p138
      %p141 = scmp.ne.s32.totalorder %s124, %s140
      %p142 = scmp.eq.s32.totalorder %s24, 0
      %p143 = por %p141, %p142
      %p144 = scmp.le.s32.totalorder 1, %s18
      %p145 = scmp.lt.s32.totalorder %s18, 3
      %p146 = pnand %p144, %p145
      %p147 = pneg %p146
      // Predicated region
      $region9: #{tpu_custom_call.1} parent=5 // pred_check
        _
      $region10: #{tpu_custom_call.1} parent=5 // pred_check_branch
        %149 = sbr.rel (%p146) target = $region12
      $region11: #{tpu_custom_call.1} parent=5 // pred_region
        %s150 = ssub.s32 %s18, 1
      $region12: #{tpu_custom_call.1} parent=5 // pred_fallthru
        _
      %p151 = scmp.lt.s32.totalorder %s18, 2
      // Predicated region
      $region13: #{tpu_custom_call.1} parent=5 // pred_check
        %p152 = pneg %p151
      $region14: #{tpu_custom_call.1} parent=5 // pred_check_branch
        %154 = sbr.rel (%p152) target = $region16
      $region15: #{tpu_custom_call.1} parent=5 // pred_region
        // Predicated region
        $region17: #{tpu_custom_call.1} parent=15 // pred_check
          %p155 = pneg %p50
        $region18: #{tpu_custom_call.1} parent=15 // pred_check_branch
          %157 = sbr.rel (%p155) target = $region20
        $region19: #{tpu_custom_call.1} parent=15 // pred_region
          %s158 = sand.u32 %s40, 1
          %s159 = scalar_lea.sflag [#allocation3], %s158
          %s160 = sand.u32 %s40, 1
          %s161 = scalar_lea.vmem [#allocation2], %s160
          %s163 = ssub.s32 16, 16
          %164 = vsyncadd %s159, %s163
          %s165 = smul.addr %s25, 16
          %s166 = scalar_lea.hbm %s0, %s165
          %s168 = sshll.u32 %s161, 4
          %s169 = int_to_ptr.vmem [resolvable:$true] %s168
          %171 = dma.hbm_to_vmem [thread:$0]  %s166, 16, %s169, %s159
        $region20: #{tpu_custom_call.1} parent=15 // pred_fallthru
          _
        // Predicated region
        $region21: #{tpu_custom_call.1} parent=15 // pred_check
          %p172 = pneg %p76
        $region22: #{tpu_custom_call.1} parent=15 // pred_check_branch
          %174 = sbr.rel (%p172) target = $region24
        $region23: #{tpu_custom_call.1} parent=15 // pred_region
          %s175 = sand.u32 %s18, 1
          %s176 = scalar_lea.sflag [#allocation6], %s175
          %s177 = sand.u32 %s66, 1
          %s178 = scalar_lea.vmem [#allocation5], %s177
          %s180 = ssub.s32 16, 16
          %181 = vsyncadd %s176, %s180
          %s182 = smul.addr %s25, 16
          %s183 = scalar_lea.hbm %s1, %s182
          %s185 = sshll.u32 %s178, 4
          %s186 = int_to_ptr.vmem [resolvable:$true] %s185
          %188 = dma.hbm_to_vmem [thread:$0]  %s183, 16, %s186, %s176
        $region24: #{tpu_custom_call.1} parent=15 // pred_fallthru
          _
        // Predicated region
        $region25: #{tpu_custom_call.1} parent=15 // pred_check
          %p189 = pneg %p102
        $region26: #{tpu_custom_call.1} parent=15 // pred_check_branch
          %191 = sbr.rel (%p189) target = $region28
        $region27: #{tpu_custom_call.1} parent=15 // pred_region
          %s192 = sand.u32 %s18, 1
          %s193 = scalar_lea.sflag [#allocation6], %s192
          %s194 = sand.u32 %s92, 1
          %s195 = smul.addr %s194, 8
          %s196 = scalar_lea.vmem [#allocation7], %s195
          %s198 = ssub.s32 128, 128
          %199 = vsyncadd %s193, %s198
          %s200 = smul.addr %s25, 128
          %s201 = scalar_lea.hbm %s2, %s200
          %s203 = sshll.u32 %s196, 4
          %s204 = int_to_ptr.vmem [resolvable:$true] %s203
          %206 = dma.hbm_to_vmem [thread:$0]  %s201, 128, %s204, %s193
        $region28: #{tpu_custom_call.1} parent=15 // pred_fallthru
          _
      $region16: #{tpu_custom_call.1} parent=5 // pred_fallthru
        _
      %p207 = scmp.le.s32.totalorder 1, %s18
      %p208 = scmp.lt.s32.totalorder %s18, 3
      %p209 = pnand %p207, %p208
      %p210 = pneg %p209
      // Predicated region
      $region29: #{tpu_custom_call.1} parent=5 // pred_check
        _
      $region30: #{tpu_custom_call.1} parent=5 // pred_check_branch
        %212 = sbr.rel (%p209) target = $region32
      $region31: #{tpu_custom_call.1} parent=5 // pred_region
        %s213 = ssub.s32 %s18, 1
        %s214 = sand.u32 %s43, 1
        %s215 = scalar_lea.sflag [#allocation3], %s214
        %s216 = sand.u32 %s43, 1
        %s217 = scalar_lea.vmem [#allocation2], %s216
        // Predicated region
        $region33: #{tpu_custom_call.1} parent=31 // pred_check
          %p218 = pneg %p56
        $region34: #{tpu_custom_call.1} parent=31 // pred_check_branch
          %220 = sbr.rel (%p218) target = $region36
        $region35: #{tpu_custom_call.1} parent=31 // pred_region
          %221 = dma.done %s215, 16
        $region36: #{tpu_custom_call.1} parent=31 // pred_fallthru
          _
        %s222 = sand.u32 %s23, 1
        %s223 = scalar_lea.sflag [#allocation6], %s222
        %s224 = sand.u32 %s69, 1
        %s225 = scalar_lea.vmem [#allocation5], %s224
        // Predicated region
        $region37: #{tpu_custom_call.1} parent=31 // pred_check
          %p226 = pneg %p82
        $region38: #{tpu_custom_call.1} parent=31 // pred_check_branch
          %228 = sbr.rel (%p226) target = $region40
        $region39: #{tpu_custom_call.1} parent=31 // pred_region
          %229 = dma.done %s223, 16
        $region40: #{tpu_custom_call.1} parent=31 // pred_fallthru
          _
        %s230 = sand.u32 %s23, 1
        %s231 = scalar_lea.sflag [#allocation6], %s230
        %s232 = sand.u32 %s95, 1
        %s233 = smul.addr %s232, 8
        %s234 = scalar_lea.vmem [#allocation7], %s233
        // Predicated region
        $region41: #{tpu_custom_call.1} parent=31 // pred_check
          %p235 = pneg %p108
        $region42: #{tpu_custom_call.1} parent=31 // pred_check_branch
          %237 = sbr.rel (%p235) target = $region44
        $region43: #{tpu_custom_call.1} parent=31 // pred_region
          %238 = dma.done %s231, 128
        $region44: #{tpu_custom_call.1} parent=31 // pred_fallthru
          _
        %s239 = sand.u32 %s43, 1
        %s240 = scalar_lea.sflag [#allocation3], %s239
        %s241 = sand.u32 %s43, 1
        %s242 = scalar_lea.vmem [#allocation2], %s241
        %p243 = pneg %p56
        %p244 = pneg %p53
        %s245 = sand.u32 %s23, 1
        %s246 = scalar_lea.sflag [#allocation6], %s245
        %s247 = sand.u32 %s69, 1
        %s248 = scalar_lea.vmem [#allocation5], %s247
        %p249 = pneg %p82
        %p250 = pneg %p79
        %s251 = sand.u32 %s23, 1
        %s252 = scalar_lea.sflag [#allocation6], %s251
        %s253 = sand.u32 %s95, 1
        %s254 = smul.addr %s253, 8
        %s255 = scalar_lea.vmem [#allocation7], %s254
        %p256 = pneg %p108
        %p257 = pneg %p105
        %p258 = pneg %p136
        %p259 = pneg %p133
        %s260 = sand.u32 %s123, 1
        %s261 = scalar_lea.sflag [#allocation4], %s260
        %s262 = sand.u32 %s123, 1
        %s263 = smul.addr %s262, 128
        %s264 = scalar_lea.vmem [#allocation8], %s263
        %s265 = smul.u32 16, %s28
        %v266 = vld [vmem:[%s217] sm:$0x1]
        %v267 = vld [vmem:[%s225] sm:$0x1]
        %s268 = smul.u32 %s28, 128
        %v269 = vlaneseq
        %v270 = vshrl.u32 %v269, 7
        %v271 = vadd.s32 %v270, 8
        %v272 = vadd.s32 %v270, 16
        %v273 = vadd.s32 %v270, 24
        %v274 = vadd.s32 %v270, 32
        %v275 = vadd.s32 %v270, 40
        %v276 = vadd.s32 %v270, 48
        %v277 = vadd.s32 %v270, 56
        %v278 = vadd.s32 %v270, 64
        %v279 = vadd.s32 %v270, 72
        %v280 = vadd.s32 %v270, 80
        %v281 = vadd.s32 %v270, 88
        %v282 = vadd.s32 %v270, 96
        %v283 = vadd.s32 %v270, 104
        %v284 = vadd.s32 %v270, 112
        %v285 = vadd.s32 %v270, 120
        %v286 = vstv %s268
        %v287 = vadd.s32 %v286, %v270
        %v288 = vadd.s32 %v286, %v271
        %v289 = vadd.s32 %v286, %v272
        %v290 = vadd.s32 %v286, %v273
        %v291 = vadd.s32 %v286, %v274
        %v292 = vadd.s32 %v286, %v275
        %v293 = vadd.s32 %v286, %v276
        %v294 = vadd.s32 %v286, %v277
        %v295 = vadd.s32 %v286, %v278
        %v296 = vadd.s32 %v286, %v279
        %v297 = vadd.s32 %v286, %v280
        %v298 = vadd.s32 %v286, %v281
        %v299 = vadd.s32 %v286, %v282
        %v300 = vadd.s32 %v286, %v283
        %v301 = vadd.s32 %v286, %v284
        %v302 = vadd.s32 %v286, %v285
        %v303 = vlaneseq
        %v304 = vshrl.u32 %v303, 7
        %v305 = vsub.s32 0, %v304
        %v306 = vrot.slane %v266, %v305
        %vm307 = vcmp.ge.s32.totalorder %v287, %v306
        %vm308 = vcmp.ge.s32.totalorder %v288, %v306
        %vm309 = vcmp.ge.s32.totalorder %v289, %v306
        %vm310 = vcmp.ge.s32.totalorder %v290, %v306
        %vm311 = vcmp.ge.s32.totalorder %v291, %v306
        %vm312 = vcmp.ge.s32.totalorder %v292, %v306
        %vm313 = vcmp.ge.s32.totalorder %v293, %v306
        %vm314 = vcmp.ge.s32.totalorder %v294, %v306
        %vm315 = vcmp.ge.s32.totalorder %v295, %v306
        %vm316 = vcmp.ge.s32.totalorder %v296, %v306
        %vm317 = vcmp.ge.s32.totalorder %v297, %v306
        %vm318 = vcmp.ge.s32.totalorder %v298, %v306
        %vm319 = vcmp.ge.s32.totalorder %v299, %v306
        %vm320 = vcmp.ge.s32.totalorder %v300, %v306
        %vm321 = vcmp.ge.s32.totalorder %v301, %v306
        %vm322 = vcmp.ge.s32.totalorder %v302, %v306
        %v323 = vlaneseq
        %v324 = vshrl.u32 %v323, 7
        %v325 = vsub.s32 0, %v324
        %v326 = vrot.slane %v267, %v325
        %vm327 = vcmp.lt.s32.totalorder %v287, %v326
        %vm328 = vcmp.lt.s32.totalorder %v288, %v326
        %vm329 = vcmp.lt.s32.totalorder %v289, %v326
        %vm330 = vcmp.lt.s32.totalorder %v290, %v326
        %vm331 = vcmp.lt.s32.totalorder %v291, %v326
        %vm332 = vcmp.lt.s32.totalorder %v292, %v326
        %vm333 = vcmp.lt.s32.totalorder %v293, %v326
        %vm334 = vcmp.lt.s32.totalorder %v294, %v326
        %vm335 = vcmp.lt.s32.totalorder %v295, %v326
        %vm336 = vcmp.lt.s32.totalorder %v296, %v326
        %vm337 = vcmp.lt.s32.totalorder %v297, %v326
        %vm338 = vcmp.lt.s32.totalorder %v298, %v326
        %vm339 = vcmp.lt.s32.totalorder %v299, %v326
        %vm340 = vcmp.lt.s32.totalorder %v300, %v326
        %vm341 = vcmp.lt.s32.totalorder %v301, %v326
        %vm342 = vcmp.lt.s32.totalorder %v302, %v326
        %vm343 = vmand %vm307, %vm327
        %vm344 = vmand %vm308, %vm328
        %vm345 = vmand %vm309, %vm329
        %vm346 = vmand %vm310, %vm330
        %vm347 = vmand %vm311, %vm331
        %vm348 = vmand %vm312, %vm332
        %vm349 = vmand %vm313, %vm333
        %vm350 = vmand %vm314, %vm334
        %vm351 = vmand %vm315, %vm335
        %vm352 = vmand %vm316, %vm336
        %vm353 = vmand %vm317, %vm337
        %vm354 = vmand %vm318, %vm338
        %vm355 = vmand %vm319, %vm339
        %vm356 = vmand %vm320, %vm340
        %vm357 = vmand %vm321, %vm341
        %vm358 = vmand %vm322, %vm342
        %v359 = vsel %vm343, 1, 0
        %v360 = vsel %vm344, 1, 0
        %v361 = vsel %vm345, 1, 0
        %v362 = vsel %vm346, 1, 0
        %v363 = vsel %vm347, 1, 0
        %v364 = vsel %vm348, 1, 0
        %v365 = vsel %vm349, 1, 0
        %v366 = vsel %vm350, 1, 0
        %v367 = vsel %vm351, 1, 0
        %v368 = vsel %vm352, 1, 0
        %v369 = vsel %vm353, 1, 0
        %v370 = vsel %vm354, 1, 0
        %v371 = vsel %vm355, 1, 0
        %v372 = vsel %vm356, 1, 0
        %v373 = vsel %vm357, 1, 0
        %v374 = vsel %vm358, 1, 0
        %v375 = vcvt.s32.f32 %v359
        %v376 = vcvt.s32.f32 %v360
        %v377 = vcvt.s32.f32 %v361
        %v378 = vcvt.s32.f32 %v362
        %v379 = vcvt.s32.f32 %v363
        %v380 = vcvt.s32.f32 %v364
        %v381 = vcvt.s32.f32 %v365
        %v382 = vcvt.s32.f32 %v366
        %v383 = vcvt.s32.f32 %v367
        %v384 = vcvt.s32.f32 %v368
        %v385 = vcvt.s32.f32 %v369
        %v386 = vcvt.s32.f32 %v370
        %v387 = vcvt.s32.f32 %v371
        %v388 = vcvt.s32.f32 %v372
        %v389 = vcvt.s32.f32 %v373
        %v390 = vcvt.s32.f32 %v374
        %v391 = vld [vmem:[%s234] sm:$0xff]
        %vm392 = vcmask 64512
        %v394 = vsel %vm392, %v375, 0
        %v397 = vsel %vm392, %v376, 0
        %v400 = vsel %vm392, %v377, 0
        %v403 = vsel %vm392, %v378, 0
        %v406 = vsel %vm392, %v379, 0
        %v409 = vsel %vm392, %v380, 0
        %v412 = vsel %vm392, %v381, 0
        %v415 = vsel %vm392, %v382, 0
        %v418 = vsel %vm392, %v383, 0
        %v421 = vsel %vm392, %v384, 0
        %v424 = vsel %vm392, %v385, 0
        %v427 = vsel %vm392, %v386, 0
        %v430 = vsel %vm392, %v387, 0
        %v433 = vsel %vm392, %v388, 0
        %v436 = vsel %vm392, %v389, 0
        %v439 = vsel %vm392, %v390, 0
        %441 = vmatprep.subr.mxu0 0.0
        %442 = vmatpush1.msra.mxu0 0.0
        %443 = vmatprep.subr.mxu0 0.0
        %444 = vmatpush1.msra.mxu0 0.0
        %445 = vmatprep.subr.mxu0 0.0
        %446 = vmatpush1.msra.mxu0 0.0
        %447 = vmatprep.subr.mxu0 0.0
        %448 = vmatpush1.msra.mxu0 0.0
        %449 = vmatprep.subr.mxu0 0.0
        %450 = vmatpush1.msra.mxu0 0.0
        %451 = vmatprep.subr.mxu0 0.0
        %452 = vmatpush1.msra.mxu0 0.0
        %453 = vmatprep.subr.mxu0 0.0
        %454 = vmatpush1.msra.mxu0 0.0
        %455 = vmatprep.subr.mxu0 0.0
        %456 = vmatpush1.msra.mxu0 0.0
        %457 = vmatprep.subr.mxu0 0.0
        %458 = vmatpush1.msra.mxu0 0.0
        %459 = vmatprep.subr.mxu0 0.0
        %460 = vmatpush1.msra.mxu0 0.0
        %461 = vmatprep.subr.mxu0 0.0
        %462 = vmatpush1.msra.mxu0 0.0
        %463 = vmatprep.subr.mxu0 0.0
        %464 = vmatpush1.msra.mxu0 0.0
        %465 = vmatprep.subr.mxu0 0.0
        %466 = vmatpush1.msra.mxu0 0.0
        %467 = vmatprep.subr.mxu0 0.0
        %468 = vmatpush1.msra.mxu0 0.0
        %469 = vmatprep.subr.mxu0 0.0
        %470 = vmatpush1.msra.mxu0 0.0
        %471 = vmatprep.subr.mxu0 0.0
        %472 = vmatpush1.msra.mxu0 %v391
        %473 = vmatprep.subr.mxu0 0.0
        %474 = vmatpush2.msra.mxu0 0.0
        %475 = vmatprep.subr.mxu0 0.0
        %476 = vmatpush2.msra.mxu0 0.0
        %477 = vmatprep.subr.mxu0 0.0
        %478 = vmatpush2.msra.mxu0 0.0
        %479 = vmatprep.subr.mxu0 0.0
        %480 = vmatpush2.msra.mxu0 0.0
        %481 = vmatprep.subr.mxu0 0.0
        %482 = vmatpush2.msra.mxu0 0.0
        %483 = vmatprep.subr.mxu0 0.0
        %484 = vmatpush2.msra.mxu0 0.0
        %485 = vmatprep.subr.mxu0 0.0
        %486 = vmatpush2.msra.mxu0 0.0
        %487 = vmatprep.subr.mxu0 0.0
        %488 = vmatpush2.msra.mxu0 0.0
        %489 = vmatprep.subr.mxu0 0.0
        %490 = vmatpush2.msra.mxu0 0.0
        %491 = vmatprep.subr.mxu0 0.0
        %492 = vmatpush2.msra.mxu0 0.0
        %493 = vmatprep.subr.mxu0 0.0
        %494 = vmatpush2.msra.mxu0 0.0
        %495 = vmatprep.subr.mxu0 0.0
        %496 = vmatpush2.msra.mxu0 0.0
        %497 = vmatprep.subr.mxu0 0.0
        %498 = vmatpush2.msra.mxu0 0.0
        %499 = vmatprep.subr.mxu0 0.0
        %500 = vmatpush2.msra.mxu0 0.0
        %501 = vmatprep.subr.mxu0 0.0
        %502 = vmatpush2.msra.mxu0 0.0
        %503 = vmatprep.subr.mxu0 0.0
        %504 = vmatpush2.msra.mxu0 0.0
        %505 = vmatprep.mubr.f32.mxu0 0.0
        %506 = vmatmul.mubr.f32.gmra.mxu0 %v394
        %v507 = vpop.f32.mrf.mxu0
        %v508 = vadd.f32 0.0, %v507
        %v509 = vpop.f32.mrf.mxu0
        %510 = vmatprep.mubr.f32.mxu0 0.0
        %511 = vmatmul.mubr.f32.gmra.mxu0 %v397
        %v512 = vpop.f32.mrf.mxu0
        %v513 = vadd.f32 0.0, %v512
        %v514 = vpop.f32.mrf.mxu0
        %515 = vmatprep.mubr.f32.mxu0 0.0
        %516 = vmatmul.mubr.f32.gmra.mxu0 %v400
        %v517 = vpop.f32.mrf.mxu0
        %v518 = vadd.f32 0.0, %v517
        %v519 = vpop.f32.mrf.mxu0
        %520 = vmatprep.mubr.f32.mxu0 0.0
        %521 = vmatmul.mubr.f32.gmra.mxu0 %v403
        %v522 = vpop.f32.mrf.mxu0
        %v523 = vadd.f32 0.0, %v522
        %v524 = vpop.f32.mrf.mxu0
        %525 = vmatprep.mubr.f32.mxu0 0.0
        %526 = vmatmul.mubr.f32.gmra.mxu0 %v406
        %v527 = vpop.f32.mrf.mxu0
        %v528 = vadd.f32 0.0, %v527
        %v529 = vpop.f32.mrf.mxu0
        %530 = vmatprep.mubr.f32.mxu0 0.0
        %531 = vmatmul.mubr.f32.gmra.mxu0 %v409
        %v532 = vpop.f32.mrf.mxu0
        %v533 = vadd.f32 0.0, %v532
        %v534 = vpop.f32.mrf.mxu0
        %535 = vmatprep.mubr.f32.mxu0 0.0
        %536 = vmatmul.mubr.f32.gmra.mxu0 %v412
        %v537 = vpop.f32.mrf.mxu0
        %v538 = vadd.f32 0.0, %v537
        %v539 = vpop.f32.mrf.mxu0
        %540 = vmatprep.mubr.f32.mxu0 0.0
        %541 = vmatmul.mubr.f32.gmra.mxu0 %v415
        %v542 = vpop.f32.mrf.mxu0
        %v543 = vadd.f32 0.0, %v542
        %v544 = vpop.f32.mrf.mxu0
        %545 = vmatprep.mubr.f32.mxu0 0.0
        %546 = vmatmul.mubr.f32.gmra.mxu0 %v418
        %v547 = vpop.f32.mrf.mxu0
        %v548 = vadd.f32 0.0, %v547
        %v549 = vpop.f32.mrf.mxu0
        %550 = vmatprep.mubr.f32.mxu0 0.0
        %551 = vmatmul.mubr.f32.gmra.mxu0 %v421
        %v552 = vpop.f32.mrf.mxu0
        %v553 = vadd.f32 0.0, %v552
        %v554 = vpop.f32.mrf.mxu0
        %555 = vmatprep.mubr.f32.mxu0 0.0
        %556 = vmatmul.mubr.f32.gmra.mxu0 %v424
        %v557 = vpop.f32.mrf.mxu0
        %v558 = vadd.f32 0.0, %v557
        %v559 = vpop.f32.mrf.mxu0
        %560 = vmatprep.mubr.f32.mxu0 0.0
        %561 = vmatmul.mubr.f32.gmra.mxu0 %v427
        %v562 = vpop.f32.mrf.mxu0
        %v563 = vadd.f32 0.0, %v562
        %v564 = vpop.f32.mrf.mxu0
        %565 = vmatprep.mubr.f32.mxu0 0.0
        %566 = vmatmul.mubr.f32.gmra.mxu0 %v430
        %v567 = vpop.f32.mrf.mxu0
        %v568 = vadd.f32 0.0, %v567
        %v569 = vpop.f32.mrf.mxu0
        %570 = vmatprep.mubr.f32.mxu0 0.0
        %571 = vmatmul.mubr.f32.gmra.mxu0 %v433
        %v572 = vpop.f32.mrf.mxu0
        %v573 = vadd.f32 0.0, %v572
        %v574 = vpop.f32.mrf.mxu0
        %575 = vmatprep.mubr.f32.mxu0 0.0
        %576 = vmatmul.mubr.f32.gmra.mxu0 %v436
        %v577 = vpop.f32.mrf.mxu0
        %v578 = vadd.f32 0.0, %v577
        %v579 = vpop.f32.mrf.mxu0
        %580 = vmatprep.mubr.f32.mxu0 0.0
        %581 = vmatmul.mubr.f32.gmra.mxu0 %v439
        %v582 = vpop.f32.mrf.mxu0
        %v583 = vadd.f32 0.0, %v582
        %v584 = vpop.f32.mrf.mxu0
        %585 = vdwg.mxu0
        %586 = vst [vmem:[%s264] sm:$0xff] %v508
        %587 = vst [vmem:[%s264 + $0x8] sm:$0xff] %v513
        %588 = vst [vmem:[%s264 + $0x10] sm:$0xff] %v518
        %589 = vst [vmem:[%s264 + $0x18] sm:$0xff] %v523
        %590 = vst [vmem:[%s264 + $0x20] sm:$0xff] %v528
        %591 = vst [vmem:[%s264 + $0x28] sm:$0xff] %v533
        %592 = vst [vmem:[%s264 + $0x30] sm:$0xff] %v538
        %593 = vst [vmem:[%s264 + $0x38] sm:$0xff] %v543
        %594 = vst [vmem:[%s264 + $0x40] sm:$0xff] %v548
        %595 = vst [vmem:[%s264 + $0x48] sm:$0xff] %v553
        %596 = vst [vmem:[%s264 + $0x50] sm:$0xff] %v558
        %597 = vst [vmem:[%s264 + $0x58] sm:$0xff] %v563
        %598 = vst [vmem:[%s264 + $0x60] sm:$0xff] %v568
        %599 = vst [vmem:[%s264 + $0x68] sm:$0xff] %v573
        %600 = vst [vmem:[%s264 + $0x70] sm:$0xff] %v578
        %601 = vst [vmem:[%s264 + $0x78] sm:$0xff] %v583
        %s602 = sand.u32 %s123, 1
        %s603 = scalar_lea.sflag [#allocation4], %s602
        %s604 = sand.u32 %s123, 1
        %s605 = smul.addr %s604, 128
        %s606 = scalar_lea.vmem [#allocation8], %s605
        // Predicated region
        $region45: #{tpu_custom_call.1} parent=31 // pred_check
          %p607 = pneg %p133
        $region46: #{tpu_custom_call.1} parent=31 // pred_check_branch
          %609 = sbr.rel (%p607) target = $region48
        $region47: #{tpu_custom_call.1} parent=31 // pred_region
          %s610 = smul.u32 16, %s28
          %s612 = ssub.s32 2048, 2048
          %613 = vsyncadd %s603, %s612
          %s614 = smul.addr %s27, 16
          %s615 = sadd.s32 %s610, %s614
          %s616 = smul.addr %s615, 128
          %s617 = scalar_lea.hbm %s3, %s616
          %s618 = sshll.u32 %s606, 4
          %s619 = int_to_ptr.vmem [resolvable:$true] %s618
          %624 = dma.vmem_to_hbm [thread:$0]  %s619, 2048, %s617, %s603, 128, 128, 8
        $region48: #{tpu_custom_call.1} parent=31 // pred_fallthru
          _
      $region32: #{tpu_custom_call.1} parent=5 // pred_fallthru
        _
      %p625 = scmp.le.s32.totalorder 2, %s18
      // Predicated region
      $region49: #{tpu_custom_call.1} parent=5 // pred_check
        %p626 = pneg %p625
      $region50: #{tpu_custom_call.1} parent=5 // pred_check_branch
        %628 = sbr.rel (%p626) target = $region52
      $region51: #{tpu_custom_call.1} parent=5 // pred_region
        %s629 = ssub.s32 %s18, 2
        // Predicated region
        $region53: #{tpu_custom_call.1} parent=51 // pred_check
          %p630 = pneg %p139
        $region54: #{tpu_custom_call.1} parent=51 // pred_check_branch
          %632 = sbr.rel (%p630) target = $region56
        $region55: #{tpu_custom_call.1} parent=51 // pred_region
          %s633 = sand.u32 %s124, 1
          %s634 = scalar_lea.sflag [#allocation4], %s633
          %s635 = sand.u32 %s124, 1
          %s636 = smul.addr %s635, 128
          %s637 = scalar_lea.vmem [#allocation8], %s636
          %638 = dma.done %s634, 2048
        $region56: #{tpu_custom_call.1} parent=51 // pred_fallthru
          _
      $region52: #{tpu_custom_call.1} parent=5 // pred_fallthru
        _
    $region6: #{tpu_custom_call.1} parent=1 // loop_footer
      %s22 = sadd.s32 1, %s18
    $region7: #{tpu_custom_call.1} parent=1 // loop_footer_branch
      %17 = sbr.rel target = $region3
    $region8: #{tpu_custom_call.1} parent=1 // loop_exit
      _
    %639 = vsyncpa [#allocation3], 1
    %s640 = scalar_lea.sflag [#allocation3], 1
    %641 = vsyncpa %s640, 1
    %642 = vsyncpa [#allocation6], 1
    %s643 = scalar_lea.sflag [#allocation6], 1
    %644 = vsyncpa %s643, 1
    %645 = vsyncpa [#allocation4], 1
    %s646 = scalar_lea.sflag [#allocation4], 1
    %647 = vsyncpa %s646, 1

</llo_original>
